<compile_context>
chip_gen: v7x
topology: tpu7x:2x2x1
jax: 0.10.0
libtpu: 0.0.40
codegen_flags: <defaults>
</compile_context>

<pallas_src>
import functools

import jax
import jax.numpy as jnp
from jax.experimental import pallas as pl
from jax.experimental.pallas import tpu as pltpu

BN_EPS = 1e-5


def _round_up(a: int, m: int) -> int:
    return ((a + m - 1) // m) * m


def mlp_kernel(x_ref, w1_ref, b1_ref, gamma_ref, beta_ref, w2_ref, b2_ref,
               o_ref, acc_ref):
    h_idx = pl.program_id(1)

    @pl.when(h_idx == 0)
    def _():
        acc_ref[...] = jnp.zeros_like(acc_ref)

    # ---- Linear 1 (bf16 operands on the MXU, f32 accumulation) ----
    h = jnp.dot(x_ref[...], w1_ref[...], preferred_element_type=jnp.float32)
    h = h + b1_ref[...]                                   # (B, tH) + (1, tH)

    # ---- BatchNorm1d, training-mode batch stats (exact: full batch per H tile) ----
    # Single reduction pass: sum & sum-of-squares; var = E[h^2] - mean^2.
    inv_b = 1.0 / h.shape[0]
    s = jnp.sum(h, axis=0, keepdims=True)                 # (1, tH)
    ss = jnp.sum(h * h, axis=0, keepdims=True)            # (1, tH)
    mean = s * inv_b
    var = ss * inv_b - mean * mean
    # Fold normalization + affine into one scale/shift pass over (B, tH).
    scale = gamma_ref[...] * jax.lax.rsqrt(var + BN_EPS)  # rsqrt -> EUP slot
    shift = beta_ref[...] - mean * scale
    h = h * scale + shift

    # ---- ReLU ----
    h = jnp.maximum(h, 0.0)

    # ---- Linear 2: partial product for this hidden tile (bf16 -> MXU, f32 acc) ----
    acc_ref[...] += jnp.dot(h.astype(jnp.bfloat16), w2_ref[...],
                            preferred_element_type=jnp.float32)

    @pl.when(h_idx == pl.num_programs(1) - 1)
    def _():
        o_ref[...] = (acc_ref[...] + b2_ref[...]).astype(o_ref.dtype)


@functools.partial(jax.jit, static_argnames=("th_cap", "tp_cap"))
def mlp_forward(x, w1, b1, gamma, beta, w2, b2, *, th_cap=512, tp_cap=256):
    B, D = x.shape
    H = w1.shape[1]
    P = w2.shape[1]
    out_dtype = x.dtype

    # Tile sizes: lane-aligned (multiples of 128), capped so the working set
    # (with 2-deep double buffering) stays well inside v7x's smaller VMEM.
    tH = min(th_cap, _round_up(H, 128))
    Hp = _round_up(H, tH)
    tP = min(tp_cap, _round_up(P, 128))
    Pp = _round_up(P, tP)

    # Zero-pad hidden / proj dims (exact: padded w2 rows & cols contribute 0;
    # padded BN features stay finite and are multiplied by zero weights).
    w1p = jnp.pad(w1, ((0, 0), (0, Hp - H))).astype(jnp.bfloat16)
    b1p = jnp.pad(b1, ((0, 0), (0, Hp - H)))
    gp = jnp.pad(gamma, ((0, 0), (0, Hp - H)), constant_values=1.0)
    bp = jnp.pad(beta, ((0, 0), (0, Hp - H)))
    w2p = jnp.pad(w2, ((0, Hp - H), (0, Pp - P))).astype(jnp.bfloat16)
    b2p = jnp.pad(b2, ((0, 0), (0, Pp - P)))
    xb = x.astype(jnp.bfloat16)

    grid = (Pp // tP, Hp // tH)

    out = pl.pallas_call(
        mlp_kernel,
        out_shape=jax.ShapeDtypeStruct((B, Pp), out_dtype),
        grid_spec=pltpu.PrefetchScalarGridSpec(
            num_scalar_prefetch=0,
            grid=grid,
            in_specs=[
                pl.BlockSpec((B, D), lambda p, h: (0, 0)),    # x   (full batch)
                pl.BlockSpec((D, tH), lambda p, h: (0, h)),   # w1  column tile
                pl.BlockSpec((1, tH), lambda p, h: (0, h)),   # b1
                pl.BlockSpec((1, tH), lambda p, h: (0, h)),   # gamma
                pl.BlockSpec((1, tH), lambda p, h: (0, h)),   # beta
                pl.BlockSpec((tH, tP), lambda p, h: (h, p)),  # w2  tile
                pl.BlockSpec((1, tP), lambda p, h: (0, p)),   # b2
            ],
            out_specs=pl.BlockSpec((B, tP), lambda p, h: (0, p)),  # resident across h
            scratch_shapes=[pltpu.VMEM((B, tP), jnp.float32)],
        ),
        compiler_params=pltpu.CompilerParams(
            dimension_semantics=("parallel", "arbitrary"),  # P tiles shard across TCs
            vmem_limit_bytes=32 * 1024 * 1024,              # safe on v7x (64 MiB total)
        ),
    )(xb, w1p, b1p, gp, bp, w2p, b2p)

    return out[:, :P]


def reference_forward(x, w1, b1, gamma, beta, w2, b2, matmul_dtype=jnp.float32):
    h = jnp.dot(x.astype(matmul_dtype), w1.astype(matmul_dtype),
                preferred_element_type=jnp.float32) + b1
    mean = jnp.mean(h, axis=0, keepdims=True)
    var = jnp.mean((h - mean) ** 2, axis=0, keepdims=True)
    h = (h - mean) * jax.lax.rsqrt(var + BN_EPS)
    h = h * gamma + beta
    h = jnp.maximum(h, 0.0)
    return jnp.dot(h.astype(matmul_dtype), w2.astype(matmul_dtype),
                   preferred_element_type=jnp.float32) + b2


if __name__ == "__main__":
    # Small shapes consistent with MLP(dim, projection_size, hidden_size);
    # hidden=256 exercises the H-reduction grid (2 tiles of 128).
    B, dim, hidden, proj = 8, 64, 256, 32

    key = jax.random.PRNGKey(0)
    kx, kw1, kb1, kw2, kb2 = jax.random.split(key, 5)

    x = jax.random.normal(kx, (B, dim), dtype=jnp.float32)

    # PyTorch-style Linear init: U(-1/sqrt(fan_in), 1/sqrt(fan_in))
    lim1 = 1.0 / jnp.sqrt(dim)
    w1 = jax.random.uniform(kw1, (dim, hidden), minval=-lim1, maxval=lim1, dtype=jnp.float32)
    b1 = jax.random.uniform(kb1, (1, hidden), minval=-lim1, maxval=lim1, dtype=jnp.float32)

    lim2 = 1.0 / jnp.sqrt(hidden)
    w2 = jax.random.uniform(kw2, (hidden, proj), minval=-lim2, maxval=lim2, dtype=jnp.float32)
    b2 = jax.random.uniform(kb2, (1, proj), minval=-lim2, maxval=lim2, dtype=jnp.float32)

    # BatchNorm affine params (PyTorch init: gamma=1, beta=0)
    gamma = jnp.ones((1, hidden), dtype=jnp.float32)
    beta = jnp.zeros((1, hidden), dtype=jnp.float32)

    out = jax.block_until_ready(mlp_forward(x, w1, b1, gamma, beta, w2, b2))
    assert out.shape == (B, proj)

    # Tight check vs. a reference that mirrors the kernel's bf16 matmul operands.
    ref_bf16 = reference_forward(x, w1, b1, gamma, beta, w2, b2, matmul_dtype=jnp.bfloat16)
    assert jnp.allclose(out, ref_bf16, atol=1e-2, rtol=1e-2)

    # Loose check vs. the pure-f32 module semantics (bf16 MXU operands only add
    # ~1e-3-level rounding relative to the original PyTorch f32 forward).
    ref_f32 = reference_forward(x, w1, b1, gamma, beta, w2, b2, matmul_dtype=jnp.float32)
    assert jnp.allclose(out, ref_f32, atol=5e-2, rtol=5e-2)

    print("KERNEL_OK")
</pallas_src>

<mosaic_0001>
module attributes {stable_mosaic.version = 11 : i64} {
  func.func @mlp_kernel(%arg0: i32, %arg1: i32, %arg2: memref<8x64xbf16, #tpu.memory_space<vmem>>, %arg3: memref<64x256xbf16, #tpu.memory_space<vmem>>, %arg4: memref<1x256xf32, #tpu.memory_space<vmem>>, %arg5: memref<1x256xf32, #tpu.memory_space<vmem>>, %arg6: memref<1x256xf32, #tpu.memory_space<vmem>>, %arg7: memref<256x128xbf16, #tpu.memory_space<vmem>>, %arg8: memref<1x128xf32, #tpu.memory_space<vmem>>, %arg9: memref<8x128xf32, #tpu.memory_space<vmem>>, %arg10: memref<8x128xf32, #tpu.memory_space<vmem>>) attributes {dimension_semantics = [#tpu.dimension_semantics<parallel>, #tpu.dimension_semantics<arbitrary>], iteration_bounds = array<i64: 1, 1>, scalar_prefetch = 0 : i64, scratch_operands = 1 : i64, tpu.core_type = #tpu.core_type<tc>, window_params = [{pipeline_mode = #tpu.pipeline_mode<synchronous>, transform_indices = @transform_0, window_bounds = array<i64: 8, 64>}, {transform_indices = @transform_1, window_bounds = array<i64: 64, 256>}, {transform_indices = @transform_2, window_bounds = array<i64: 1, 256>}, {transform_indices = @transform_3, window_bounds = array<i64: 1, 256>}, {transform_indices = @transform_4, window_bounds = array<i64: 1, 256>}, {transform_indices = @transform_5, window_bounds = array<i64: 256, 128>}, {transform_indices = @transform_6, window_bounds = array<i64: 1, 128>}, {transform_indices = @transform_7, window_bounds = array<i64: 8, 128>}]} {
    %c0_i32 = arith.constant 0 : i32
    %0 = arith.cmpi eq, %arg1, %c0_i32 : i32
    %1 = arith.extui %0 : i1 to i32
    %c0_i32_0 = arith.constant 0 : i32
    %2 = arith.cmpi ne, %1, %c0_i32_0 : i32
    scf.if %2 {
      %cst_25 = arith.constant 0.000000e+00 : f32
      %43 = vector.broadcast %cst_25 : f32 to vector<8x128xf32>
      %c0_26 = arith.constant 0 : index
      %c0_27 = arith.constant 0 : index
      %44 = vector.load %arg10[%c0_26, %c0_27] : memref<8x128xf32, #tpu.memory_space<vmem>>, vector<8x128xf32>
      tpu.vector_store %arg10[%c0_26, %c0_27], %43 {strides = array<i32>} : memref<8x128xf32, #tpu.memory_space<vmem>>, vector<8x128xf32>,
    } else {
    }
    %c0 = arith.constant 0 : index
    %c0_1 = arith.constant 0 : index
    %3 = vector.load %arg2[%c0, %c0_1] : memref<8x64xbf16, #tpu.memory_space<vmem>>, vector<8x64xbf16>
    %c0_2 = arith.constant 0 : index
    %c0_3 = arith.constant 0 : index
    %4 = vector.load %arg3[%c0_2, %c0_3] : memref<64x256xbf16, #tpu.memory_space<vmem>>, vector<64x256xbf16>
    %cst = arith.constant dense<0.000000e+00> : vector<8x256xf32>
    %5 = tpu.matmul %3, %4, %cst {dimension_numbers = #tpu.dot_dimension_numbers<[1], [0], [0], [1], [0, 0, 1, 1], [], []>} : vector<8x64xbf16>, vector<64x256xbf16>, vector<8x256xf32> -> vector<8x256xf32>
    %c0_4 = arith.constant 0 : index
    %c0_5 = arith.constant 0 : index
    %6 = vector.load %arg4[%c0_4, %c0_5] : memref<1x256xf32, #tpu.memory_space<vmem>>, vector<1x256xf32>
    %7 = vector.broadcast %6 : vector<1x256xf32> to vector<8x256xf32>
    %8 = arith.addf %5, %7 : vector<8x256xf32>
    %cst_6 = arith.constant dense<0.000000e+00> : vector<256xf32>
    %9 = vector.multi_reduction <add>, %8, %cst_6 [0] : vector<8x256xf32> to vector<256xf32>
    %10 = vector.shape_cast %9 : vector<256xf32> to vector<1x256xf32>
    %11 = arith.mulf %8, %8 : vector<8x256xf32>
    %cst_7 = arith.constant dense<0.000000e+00> : vector<256xf32>
    %12 = vector.multi_reduction <add>, %11, %cst_7 [0] : vector<8x256xf32> to vector<256xf32>
    %13 = vector.shape_cast %12 : vector<256xf32> to vector<1x256xf32>
    %cst_8 = arith.constant 1.250000e-01 : f32
    %14 = vector.broadcast %cst_8 : f32 to vector<1x256xf32>
    %15 = arith.mulf %10, %14 : vector<1x256xf32>
    %cst_9 = arith.constant 1.250000e-01 : f32
    %16 = vector.broadcast %cst_9 : f32 to vector<1x256xf32>
    %17 = arith.mulf %13, %16 : vector<1x256xf32>
    %18 = arith.mulf %15, %15 : vector<1x256xf32>
    %19 = arith.subf %17, %18 : vector<1x256xf32>
    %c0_10 = arith.constant 0 : index
    %c0_11 = arith.constant 0 : index
    %20 = vector.load %arg5[%c0_10, %c0_11] : memref<1x256xf32, #tpu.memory_space<vmem>>, vector<1x256xf32>
    %cst_12 = arith.constant 9.99999974E-6 : f32
    %21 = vector.broadcast %cst_12 : f32 to vector<1x256xf32>
    %22 = arith.addf %19, %21 : vector<1x256xf32>
    %23 = math.rsqrt %22 : vector<1x256xf32>
    %24 = arith.mulf %20, %23 : vector<1x256xf32>
    %c0_13 = arith.constant 0 : index
    %c0_14 = arith.constant 0 : index
    %25 = vector.load %arg6[%c0_13, %c0_14] : memref<1x256xf32, #tpu.memory_space<vmem>>, vector<1x256xf32>
    %26 = arith.mulf %15, %24 : vector<1x256xf32>
    %27 = arith.subf %25, %26 : vector<1x256xf32>
    %28 = vector.broadcast %24 : vector<1x256xf32> to vector<8x256xf32>
    %29 = arith.mulf %8, %28 : vector<8x256xf32>
    %30 = vector.broadcast %27 : vector<1x256xf32> to vector<8x256xf32>
    %31 = arith.addf %29, %30 : vector<8x256xf32>
    %cst_15 = arith.constant 0.000000e+00 : f32
    %32 = vector.broadcast %cst_15 : f32 to vector<8x256xf32>
    %33 = arith.maximumf %31, %32 : vector<8x256xf32>
    %c0_16 = arith.constant 0 : index
    %c0_17 = arith.constant 0 : index
    %34 = vector.load %arg10[%c0_16, %c0_17] : memref<8x128xf32, #tpu.memory_space<vmem>>, vector<8x128xf32>
    %35 = arith.truncf %33 : vector<8x256xf32> to vector<8x256xbf16>
    %c0_18 = arith.constant 0 : index
    %c0_19 = arith.constant 0 : index
    %36 = vector.load %arg7[%c0_18, %c0_19] : memref<256x128xbf16, #tpu.memory_space<vmem>>, vector<256x128xbf16>
    %cst_20 = arith.constant dense<0.000000e+00> : vector<8x128xf32>
    %37 = tpu.matmul %35, %36, %cst_20 {dimension_numbers = #tpu.dot_dimension_numbers<[1], [0], [0], [1], [0, 0, 1, 1], [], []>} : vector<8x256xbf16>, vector<256x128xbf16>, vector<8x128xf32> -> vector<8x128xf32>
    %38 = arith.addf %34, %37 : vector<8x128xf32>
    %c0_21 = arith.constant 0 : index
    %c0_22 = arith.constant 0 : index
    %39 = vector.load %arg10[%c0_21, %c0_22] : memref<8x128xf32, #tpu.memory_space<vmem>>, vector<8x128xf32>
    tpu.vector_store %arg10[%c0_21, %c0_22], %38 {strides = array<i32>} : memref<8x128xf32, #tpu.memory_space<vmem>>, vector<8x128xf32>,
    %c0_i32_23 = arith.constant 0 : i32
    %40 = arith.cmpi eq, %arg1, %c0_i32_23 : i32
    %41 = arith.extui %40 : i1 to i32
    %c0_i32_24 = arith.constant 0 : i32
    %42 = arith.cmpi ne, %41, %c0_i32_24 : i32
    scf.if %42 {
      %c0_25 = arith.constant 0 : index
      %c0_26 = arith.constant 0 : index
      %43 = vector.load %arg10[%c0_25, %c0_26] : memref<8x128xf32, #tpu.memory_space<vmem>>, vector<8x128xf32>
      %c0_27 = arith.constant 0 : index
      %c0_28 = arith.constant 0 : index
      %44 = vector.load %arg8[%c0_27, %c0_28] : memref<1x128xf32, #tpu.memory_space<vmem>>, vector<1x128xf32>
      %45 = vector.broadcast %44 : vector<1x128xf32> to vector<8x128xf32>
      %46 = arith.addf %43, %45 : vector<8x128xf32>
      %c0_29 = arith.constant 0 : index
      %c0_30 = arith.constant 0 : index
      %47 = vector.load %arg9[%c0_29, %c0_30] : memref<8x128xf32, #tpu.memory_space<vmem>>, vector<8x128xf32>
      tpu.vector_store %arg9[%c0_29, %c0_30], %46 {strides = array<i32>} : memref<8x128xf32, #tpu.memory_space<vmem>>, vector<8x128xf32>,
    } else {
    }
    return
  }
  func.func @transform_0(%arg0: i32, %arg1: i32) -> (i32, i32) {
    %c0_i32 = arith.constant 0 : i32
    %c0_i32_0 = arith.constant 0 : i32
    %c0_i32_1 = arith.constant 0 : i32
    return %c0_i32, %c0_i32_0 : i32, i32
  }
  func.func @transform_1(%arg0: i32, %arg1: i32) -> (i32, i32) {
    %c0_i32 = arith.constant 0 : i32
    %c0_i32_0 = arith.constant 0 : i32
    return %c0_i32, %arg1 : i32, i32
  }
  func.func @transform_2(%arg0: i32, %arg1: i32) -> (i32, i32) {
    %c0_i32 = arith.constant 0 : i32
    %c0_i32_0 = arith.constant 0 : i32
    return %c0_i32, %arg1 : i32, i32
  }
  func.func @transform_3(%arg0: i32, %arg1: i32) -> (i32, i32) {
    %c0_i32 = arith.constant 0 : i32
    %c0_i32_0 = arith.constant 0 : i32
    return %c0_i32, %arg1 : i32, i32
  }
  func.func @transform_4(%arg0: i32, %arg1: i32) -> (i32, i32) {
    %c0_i32 = arith.constant 0 : i32
    %c0_i32_0 = arith.constant 0 : i32
    return %c0_i32, %arg1 : i32, i32
  }
  func.func @transform_5(%arg0: i32, %arg1: i32) -> (i32, i32) {
    %c0_i32 = arith.constant 0 : i32
    return %arg1, %arg0 : i32, i32
  }
  func.func @transform_6(%arg0: i32, %arg1: i32) -> (i32, i32) {
    %c0_i32 = arith.constant 0 : i32
    %c0_i32_0 = arith.constant 0 : i32
    return %c0_i32, %arg0 : i32, i32
  }
  func.func @transform_7(%arg0: i32, %arg1: i32) -> (i32, i32) {
    %c0_i32 = arith.constant 0 : i32
    %c0_i32_0 = arith.constant 0 : i32
    return %c0_i32, %arg0 : i32, i32
  }
}

</mosaic_0001>

<llo_original>
// kernel: mlp_forward.1
$region0: #{mlp_forward.1}
  #allocation0 [shape = 'u32[]', space=smem, size = 0x4, offset = 0x4, fixed_abs, tag = 'smem constant byte address 0x4 - core index']
  #allocation1 [shape = 'u32[144,128]{1,0:T(1,128)}', space=vmem, size = 0x12000, scoped, tag = 'internal scratch']
  #allocation2 [shape = 'f32[8,128]{1,0:T(8,128)}', space=vmem, size = 0x1000, scoped, tag = 'scratch operand']
  %s0 = inlined_call_operand.vmem [shape: bf16[8,64], index: 0, kind: input, shape index: {}]
  %s1 = inlined_call_operand.vmem [shape: bf16[64,256], index: 1, kind: input, shape index: {}]
  %s2 = inlined_call_operand.vmem [shape: f32[1,256], index: 2, kind: input, shape index: {}]
  %s3 = inlined_call_operand.vmem [shape: f32[1,256], index: 3, kind: input, shape index: {}]
  %s4 = inlined_call_operand.vmem [shape: f32[1,256], index: 4, kind: input, shape index: {}]
  %s5 = inlined_call_operand.vmem [shape: bf16[256,128], index: 5, kind: input, shape index: {}]
  %s6 = inlined_call_operand.vmem [shape: f32[1,128], index: 6, kind: input, shape index: {}]
  %s7 = inlined_call_operand.hbm [shape: f32[8,128], index: 7, kind: output, shape index: {}]
  %s8 = sld [smem:[#allocation0]]
  $region46: #{mlp_forward.1} parent=0
    _
  %s10 = ssub.s32 1, %s8
  %s11 = scalar_select 0, %s10, %s8
  $region1: #{mlp_forward.1} parent=0
    #allocation3 [shape = 'u8[4096]{0}', space=vmem, size = 0x1000, scoped, tag = 'output window, operand 0, single buffered']
    #allocation4 [shape = 's32[1]{0}', space=sflag, size = 0x4, scoped, tag = 'scoped memory for mlp_forward.1']
    %12 = vsyncpa [#allocation4], 0
    // Predicated region
    $region2: #{mlp_forward.1} parent=1 // pred_check
      _
    $region3: #{mlp_forward.1} parent=1 // pred_check_branch
      %14 = sbr.rel (0) target = $region5
    $region4: #{mlp_forward.1} parent=1 // pred_region
      _
    $region5: #{mlp_forward.1} parent=1 // pred_fallthru
      _
    // Predicated region
    $region6: #{mlp_forward.1} parent=1 // pred_check
      _
    $region7: #{mlp_forward.1} parent=1 // pred_check_branch
      %16 = sbr.rel (0) target = $region9
    $region8: #{mlp_forward.1} parent=1 // pred_region
      _
    $region9: #{mlp_forward.1} parent=1 // pred_fallthru
      _
    // Predicated region
    $region10: #{mlp_forward.1} parent=1 // pred_check
      _
    $region11: #{mlp_forward.1} parent=1 // pred_check_branch
      %18 = sbr.rel (0) target = $region13
    $region12: #{mlp_forward.1} parent=1 // pred_region
      _
    $region13: #{mlp_forward.1} parent=1 // pred_fallthru
      _
    // Predicated region
    $region14: #{mlp_forward.1} parent=1 // pred_check
      _
    $region15: #{mlp_forward.1} parent=1 // pred_check_branch
      %20 = sbr.rel (0) target = $region17
    $region16: #{mlp_forward.1} parent=1 // pred_region
      _
    $region17: #{mlp_forward.1} parent=1 // pred_fallthru
      _
    // Predicated region
    $region18: #{mlp_forward.1} parent=1 // pred_check
      _
    $region19: #{mlp_forward.1} parent=1 // pred_check_branch
      %22 = sbr.rel (0) target = $region21
    $region20: #{mlp_forward.1} parent=1 // pred_region
      _
    $region21: #{mlp_forward.1} parent=1 // pred_fallthru
      _
    // Predicated region
    $region22: #{mlp_forward.1} parent=1 // pred_check
      _
    $region23: #{mlp_forward.1} parent=1 // pred_check_branch
      %24 = sbr.rel (0) target = $region25
    $region24: #{mlp_forward.1} parent=1 // pred_region
      _
    $region25: #{mlp_forward.1} parent=1 // pred_fallthru
      _
    // Predicated region
    $region26: #{mlp_forward.1} parent=1 // pred_check
      _
    $region27: #{mlp_forward.1} parent=1 // pred_check_branch
      %26 = sbr.rel (0) target = $region29
    $region28: #{mlp_forward.1} parent=1 // pred_region
      _
    $region29: #{mlp_forward.1} parent=1 // pred_fallthru
      _
    %p28 = scmp.eq.s32.totalorder 0, 0
    // Predicated region
    $region30: #{mlp_forward.1} parent=1 // pred_check
      %p29 = pneg %p28
    $region31: #{mlp_forward.1} parent=1 // pred_check_branch
      %31 = sbr.rel (%p29) target = $region33
    $region32: #{mlp_forward.1} parent=1 // pred_region
      %32 = vst [vmem:[#allocation2] sm:$0xff] 0.0
    $region33: #{mlp_forward.1} parent=1 // pred_fallthru
      _
    %v33 = vld [vmem:[%s0] sm:$0xf]
    %v34 = vld [vmem:[%s1] sm:$0xff]
    %v35 = vld [vmem:[%s1 + $0x8] sm:$0xff]
    %v36 = vld [vmem:[%s1 + $0x10] sm:$0xff]
    %v37 = vld [vmem:[%s1 + $0x18] sm:$0xff]
    %v38 = vld [vmem:[%s1 + $0x20] sm:$0xff]
    %v39 = vld [vmem:[%s1 + $0x28] sm:$0xff]
    %v40 = vld [vmem:[%s1 + $0x30] sm:$0xff]
    %v41 = vld [vmem:[%s1 + $0x38] sm:$0xff]
    %v42 = vld [vmem:[%s2] sm:$0x3]
    %v44 = vlaneseq
    %v45 = vshrl.u32 %v44, 7
    %v46 = vsub.s32 0, %v45
    %v47 = vrot.slane %v42, %v46
    %v48 = vlaneseq
    %v49 = vshrl.u32 %v48, 7
    %v50 = vsub.s32 1, %v49
    %v51 = vrot.slane %v42, %v50
    %v62 = vunpack.c.l.b16 %v34
    %v63 = vunpack.c.h.b16 %v34
    %v64 = vunpack.c.l.b16 %v35
    %v65 = vunpack.c.h.b16 %v35
    %v66 = vunpack.c.l.b16 %v36
    %v67 = vunpack.c.h.b16 %v36
    %v68 = vunpack.c.l.b16 %v37
    %v69 = vunpack.c.h.b16 %v37
    %v70 = vunpack.c.l.b16 %v38
    %v71 = vunpack.c.h.b16 %v38
    %v72 = vunpack.c.l.b16 %v39
    %v73 = vunpack.c.h.b16 %v39
    %v74 = vunpack.c.l.b16 %v40
    %v75 = vunpack.c.h.b16 %v40
    %v76 = vunpack.c.l.b16 %v41
    %v77 = vunpack.c.h.b16 %v41
    %v78 = vpack.c.b16 %v64, %v62
    %v79 = vpack.c.b16 %v65, %v63
    %v80 = vpack.c.b16 %v68, %v66
    %v81 = vpack.c.b16 %v69, %v67
    %v82 = vpack.c.b16 %v72, %v70
    %v83 = vpack.c.b16 %v73, %v71
    %v84 = vpack.c.b16 %v76, %v74
    %v85 = vpack.c.b16 %v77, %v75
    %vm94 = vcmask 523264
    %v96 = vsel %vm94, %v33, 0
    %98 = vmatprep.subr.bf16.mxu0 %v79
    %99 = vmatpush1.bf16.msra.mxu0 %v78
    %100 = vmatprep.subr.bf16.mxu0 %v81
    %101 = vmatpush1.bf16.msra.mxu0 %v80
    %102 = vmatprep.subr.bf16.mxu0 %v83
    %103 = vmatpush1.bf16.msra.mxu0 %v82
    %104 = vmatprep.subr.bf16.mxu0 %v85
    %105 = vmatpush1.bf16.msra.mxu0 %v84
    %106 = vmatprep.subr.bf16.mxu0 0
    %107 = vmatpush1.bf16.msra.mxu0 0
    %108 = vmatprep.subr.bf16.mxu0 0
    %109 = vmatpush1.bf16.msra.mxu0 0
    %110 = vmatprep.subr.bf16.mxu0 0
    %111 = vmatpush1.bf16.msra.mxu0 0
    %112 = vmatprep.subr.bf16.mxu0 0
    %113 = vmatpush1.bf16.msra.mxu0 0
    %114 = vmatprep.subr.bf16.mxu0 0
    %115 = vmatpush1.bf16.msra.mxu0 0
    %116 = vmatprep.subr.bf16.mxu0 0
    %117 = vmatpush1.bf16.msra.mxu0 0
    %118 = vmatprep.subr.bf16.mxu0 0
    %119 = vmatpush1.bf16.msra.mxu0 0
    %120 = vmatprep.subr.bf16.mxu0 0
    %121 = vmatpush1.bf16.msra.mxu0 0
    %122 = vmatprep.subr.bf16.mxu0 0
    %123 = vmatpush1.bf16.msra.mxu0 0
    %124 = vmatprep.subr.bf16.mxu0 0
    %125 = vmatpush1.bf16.msra.mxu0 0
    %126 = vmatprep.subr.bf16.mxu0 0
    %127 = vmatpush1.bf16.msra.mxu0 0
    %128 = vmatprep.subr.bf16.mxu0 0
    %129 = vmatpush1.bf16.msra.mxu0 0
    %130 = vmatprep.mubr.bf16.mxu0 0
    %131 = vmatmul.mubr.bf16.gmra.mrb[0].mxu0 %v96
    %v132 = vpop.f32.mrb[0].mxu0
    %v133 = vadd.f32 %v47, %v132
    %v134 = vpop.f32.mrb[0].mxu0
    %v135 = vadd.f32 %v51, %v134
    %v136 = vpop.f32.mrb[0].mxu0
    %v137 = vpop.f32.mrb[0].mxu0
    %138 = vdwg.mxu0
    %v139 = vrot.slane %v133, 4
    %v140 = vadd.f32 %v133, %v139
    %v141 = vrot.slane %v140, 2
    %v142 = vadd.f32 %v140, %v141
    %v143 = vrot.slane %v142, 1
    %v144 = vadd.f32 %v142, %v143
    %v145 = vrot.slane %v135, 4
    %v146 = vadd.f32 %v135, %v145
    %v147 = vrot.slane %v146, 2
    %v148 = vadd.f32 %v146, %v147
    %v149 = vrot.slane %v148, 1
    %v150 = vadd.f32 %v148, %v149
    %v151 = vmul.f32 %v133, %v133
    %v152 = vmul.f32 %v135, %v135
    %v153 = vrot.slane %v151, 4
    %v154 = vadd.f32 %v151, %v153
    %v155 = vrot.slane %v154, 2
    %v156 = vadd.f32 %v154, %v155
    %v157 = vrot.slane %v156, 1
    %v158 = vadd.f32 %v156, %v157
    %v159 = vrot.slane %v152, 4
    %v160 = vadd.f32 %v152, %v159
    %v161 = vrot.slane %v160, 2
    %v162 = vadd.f32 %v160, %v161
    %v163 = vrot.slane %v162, 1
    %v164 = vadd.f32 %v162, %v163
    %v165 = vmul.f32 %v144, 0.125
    %v166 = vmul.f32 %v150, 0.125
    %v167 = vmul.f32 %v158, 0.125
    %v168 = vmul.f32 %v164, 0.125
    %v169 = vmul.f32 %v165, %v165
    %v170 = vmul.f32 %v166, %v166
    %v171 = vsub.f32 %v167, %v169
    %v172 = vsub.f32 %v168, %v170
    %v173 = vld [vmem:[%s3] sm:$0x3]
    %v174 = vadd.f32 %v171, 1e-05
    %v175 = vadd.f32 %v172, 1e-05
    %v176 = vrsqrt.pop %v174
    %v177 = vrsqrt.pop %v175
    %v180 = vcombine.low %v176, %v177
    %v182 = vunpack.c.l.s4 1966171168
    %v183 = vunpack.c.0.s8 %v182
    %v184 = vlaneseq
    %v185 = vshrl.u32 %v184, 7
    %v186 = vsub.s32 %v183, %v185
    %v187 = vrot.slane %v180, %v186
    %v189 = vunpack.c.l.s4 1966171168
    %v190 = vunpack.c.0.s8 %v189
    %v191 = vlaneseq
    %v192 = vshrl.u32 %v191, 7
    %v193 = vsub.s32 %v190, %v192
    %v194 = vrot.slane %v187, %v193
    %v196 = vmul.f32 %v173, %v194
    %v197 = vld [vmem:[%s4] sm:$0x3]
    %v199 = vlaneseq
    %v200 = vshrl.u32 %v199, 7
    %v201 = vsub.s32 0, %v200
    %v202 = vrot.slane %v196, %v201
    %v203 = vlaneseq
    %v204 = vshrl.u32 %v203, 7
    %v205 = vsub.s32 1, %v204
    %v206 = vrot.slane %v196, %v205
    %v209 = vmul.f32 %v165, %v202
    %v210 = vmul.f32 %v166, %v206
    %v213 = vcombine.low %v209, %v210
    %v215 = vunpack.c.l.s4 1966171168
    %v216 = vunpack.c.0.s8 %v215
    %v217 = vlaneseq
    %v218 = vshrl.u32 %v217, 7
    %v219 = vsub.s32 %v216, %v218
    %v220 = vrot.slane %v213, %v219
    %v222 = vunpack.c.l.s4 1966171168
    %v223 = vunpack.c.0.s8 %v222
    %v224 = vlaneseq
    %v225 = vshrl.u32 %v224, 7
    %v226 = vsub.s32 %v223, %v225
    %v227 = vrot.slane %v220, %v226
    %v229 = vsub.f32 %v197, %v227
    %v230 = vmul.f32 %v133, %v202
    %v231 = vmul.f32 %v135, %v206
    %v233 = vlaneseq
    %v234 = vshrl.u32 %v233, 7
    %v235 = vsub.s32 0, %v234
    %v236 = vrot.slane %v229, %v235
    %v237 = vlaneseq
    %v238 = vshrl.u32 %v237, 7
    %v239 = vsub.s32 1, %v238
    %v240 = vrot.slane %v229, %v239
    %v243 = vadd.f32 %v230, %v236
    %v244 = vadd.f32 %v231, %v240
    %v245 = vmax.f32 %v243, 0.0
    %v246 = vmax.f32 %v244, 0.0
    %v247 = vld [vmem:[#allocation2] sm:$0xff]
    %v248 = vpack.c.bf16 %v245, %v245
    %v249 = vpack.c.bf16 %v246, %v246
    %v250 = vld [vmem:[%s5] sm:$0xf]
    %v251 = vld [vmem:[%s5 + $0x4] sm:$0xf]
    %v252 = vld [vmem:[%s5 + $0x8] sm:$0xf]
    %v253 = vld [vmem:[%s5 + $0xc] sm:$0xf]
    %v254 = vld [vmem:[%s5 + $0x10] sm:$0xf]
    %v255 = vld [vmem:[%s5 + $0x14] sm:$0xf]
    %v256 = vld [vmem:[%s5 + $0x18] sm:$0xf]
    %v257 = vld [vmem:[%s5 + $0x1c] sm:$0xf]
    %v258 = vld [vmem:[%s5 + $0x20] sm:$0xf]
    %v259 = vld [vmem:[%s5 + $0x24] sm:$0xf]
    %v260 = vld [vmem:[%s5 + $0x28] sm:$0xf]
    %v261 = vld [vmem:[%s5 + $0x2c] sm:$0xf]
    %v262 = vld [vmem:[%s5 + $0x30] sm:$0xf]
    %v263 = vld [vmem:[%s5 + $0x34] sm:$0xf]
    %v264 = vld [vmem:[%s5 + $0x38] sm:$0xf]
    %v265 = vld [vmem:[%s5 + $0x3c] sm:$0xf]
    %v266 = vld [vmem:[%s5 + $0x40] sm:$0xf]
    %v267 = vld [vmem:[%s5 + $0x44] sm:$0xf]
    %v268 = vld [vmem:[%s5 + $0x48] sm:$0xf]
    %v269 = vld [vmem:[%s5 + $0x4c] sm:$0xf]
    %v270 = vld [vmem:[%s5 + $0x50] sm:$0xf]
    %v271 = vld [vmem:[%s5 + $0x54] sm:$0xf]
    %v272 = vld [vmem:[%s5 + $0x58] sm:$0xf]
    %v273 = vld [vmem:[%s5 + $0x5c] sm:$0xf]
    %v274 = vld [vmem:[%s5 + $0x60] sm:$0xf]
    %v275 = vld [vmem:[%s5 + $0x64] sm:$0xf]
    %v276 = vld [vmem:[%s5 + $0x68] sm:$0xf]
    %v277 = vld [vmem:[%s5 + $0x6c] sm:$0xf]
    %v278 = vld [vmem:[%s5 + $0x70] sm:$0xf]
    %v279 = vld [vmem:[%s5 + $0x74] sm:$0xf]
    %v280 = vld [vmem:[%s5 + $0x78] sm:$0xf]
    %v281 = vld [vmem:[%s5 + $0x7c] sm:$0xf]
    %v314 = vunpack.c.l.b16 %v250
    %v315 = vunpack.c.l.b16 %v251
    %v316 = vunpack.c.l.b16 %v252
    %v317 = vunpack.c.l.b16 %v253
    %v318 = vunpack.c.l.b16 %v254
    %v319 = vunpack.c.l.b16 %v255
    %v320 = vunpack.c.l.b16 %v256
    %v321 = vunpack.c.l.b16 %v257
    %v322 = vunpack.c.l.b16 %v258
    %v323 = vunpack.c.l.b16 %v259
    %v324 = vunpack.c.l.b16 %v260
    %v325 = vunpack.c.l.b16 %v261
    %v326 = vunpack.c.l.b16 %v262
    %v327 = vunpack.c.l.b16 %v263
    %v328 = vunpack.c.l.b16 %v264
    %v329 = vunpack.c.l.b16 %v265
    %v330 = vunpack.c.l.b16 %v266
    %v331 = vunpack.c.l.b16 %v267
    %v332 = vunpack.c.l.b16 %v268
    %v333 = vunpack.c.l.b16 %v269
    %v334 = vunpack.c.l.b16 %v270
    %v335 = vunpack.c.l.b16 %v271
    %v336 = vunpack.c.l.b16 %v272
    %v337 = vunpack.c.l.b16 %v273
    %v338 = vunpack.c.l.b16 %v274
    %v339 = vunpack.c.l.b16 %v275
    %v340 = vunpack.c.l.b16 %v276
    %v341 = vunpack.c.l.b16 %v277
    %v342 = vunpack.c.l.b16 %v278
    %v343 = vunpack.c.l.b16 %v279
    %v344 = vunpack.c.l.b16 %v280
    %v345 = vunpack.c.l.b16 %v281
    %v346 = vpack.c.b16 %v315, %v314
    %v347 = vpack.c.b16 %v317, %v316
    %v348 = vpack.c.b16 %v319, %v318
    %v349 = vpack.c.b16 %v321, %v320
    %v350 = vpack.c.b16 %v323, %v322
    %v351 = vpack.c.b16 %v325, %v324
    %v352 = vpack.c.b16 %v327, %v326
    %v353 = vpack.c.b16 %v329, %v328
    %v354 = vpack.c.b16 %v331, %v330
    %v355 = vpack.c.b16 %v333, %v332
    %v356 = vpack.c.b16 %v335, %v334
    %v357 = vpack.c.b16 %v337, %v336
    %v358 = vpack.c.b16 %v339, %v338
    %v359 = vpack.c.b16 %v341, %v340
    %v360 = vpack.c.b16 %v343, %v342
    %v361 = vpack.c.b16 %v345, %v344
    %378 = vmatprep.subr.bf16.mxu0 0
    %379 = vmatpush1.bf16.msra.mxu0 %v346
    %380 = vmatprep.subr.bf16.mxu0 0
    %381 = vmatpush1.bf16.msra.mxu0 %v347
    %382 = vmatprep.subr.bf16.mxu0 0
    %383 = vmatpush1.bf16.msra.mxu0 %v348
    %384 = vmatprep.subr.bf16.mxu0 0
    %385 = vmatpush1.bf16.msra.mxu0 %v349
    %386 = vmatprep.subr.bf16.mxu0 0
    %387 = vmatpush1.bf16.msra.mxu0 %v350
    %388 = vmatprep.subr.bf16.mxu0 0
    %389 = vmatpush1.bf16.msra.mxu0 %v351
    %390 = vmatprep.subr.bf16.mxu0 0
    %391 = vmatpush1.bf16.msra.mxu0 %v352
    %392 = vmatprep.subr.bf16.mxu0 0
    %393 = vmatpush1.bf16.msra.mxu0 %v353
    %394 = vmatprep.subr.bf16.mxu0 0
    %395 = vmatpush1.bf16.msra.mxu0 %v354
    %396 = vmatprep.subr.bf16.mxu0 0
    %397 = vmatpush1.bf16.msra.mxu0 %v355
    %398 = vmatprep.subr.bf16.mxu0 0
    %399 = vmatpush1.bf16.msra.mxu0 %v356
    %400 = vmatprep.subr.bf16.mxu0 0
    %401 = vmatpush1.bf16.msra.mxu0 %v357
    %402 = vmatprep.subr.bf16.mxu0 0
    %403 = vmatpush1.bf16.msra.mxu0 %v358
    %404 = vmatprep.subr.bf16.mxu0 0
    %405 = vmatpush1.bf16.msra.mxu0 %v359
    %406 = vmatprep.subr.bf16.mxu0 0
    %407 = vmatpush1.bf16.msra.mxu0 %v360
    %408 = vmatprep.subr.bf16.mxu0 0
    %409 = vmatpush1.bf16.msra.mxu0 %v361
    %410 = vmatprep.mubr.bf16.mxu0 %v249
    %411 = vmatmul.mubr.bf16.gmra.mrb[0].mxu0 %v248
    %v412 = vpop.f32.mrb[0].mxu0
    %v413 = vadd.f32 0.0, %v412
    %v414 = vpop.f32.mrb[0].mxu0
    %v415 = vpop.f32.mrb[0].mxu0
    %v416 = vpop.f32.mrb[0].mxu0
    %417 = vdwg.mxu0
    %v418 = vadd.f32 %v247, %v413
    %419 = vst [vmem:[#allocation2] sm:$0xff] %v418
    // Predicated region
    $region34: #{mlp_forward.1} parent=1 // pred_check
      %p420 = pneg %p28
    $region35: #{mlp_forward.1} parent=1 // pred_check_branch
      %422 = sbr.rel (%p420) target = $region37
    $region36: #{mlp_forward.1} parent=1 // pred_region
      %v423 = vld [vmem:[#allocation2] sm:$0xff]
      %v424 = vld [vmem:[%s6] sm:$0x1]
      %v426 = vlaneseq
      %v427 = vshrl.u32 %v426, 7
      %v428 = vsub.s32 0, %v427
      %v429 = vrot.slane %v424, %v428
      %v431 = vadd.f32 %v423, %v429
      %432 = vst [vmem:[#allocation3] sm:$0xff] %v431
    $region37: #{mlp_forward.1} parent=1 // pred_fallthru
      _
    // Predicated region
    $region38: #{mlp_forward.1} parent=1 // pred_check
      _
    $region39: #{mlp_forward.1} parent=1 // pred_check_branch
      %434 = sbr.rel (0) target = $region41
    $region40: #{mlp_forward.1} parent=1 // pred_region
      %s436 = ssub.s32 128, 128
      %437 = vsyncadd [#allocation4], %s436
      %s439 = sshll.u32 [#allocation3], 4
      %s440 = int_to_ptr.vmem [resolvable:$true] %s439
      %442 = dma.vmem_to_hbm [thread:$0]  %s440, 128, %s7, [#allocation4]
    $region41: #{mlp_forward.1} parent=1 // pred_fallthru
      _
    // Predicated region
    $region42: #{mlp_forward.1} parent=1 // pred_check
      _
    $region43: #{mlp_forward.1} parent=1 // pred_check_branch
      %444 = sbr.rel (0) target = $region45
    $region44: #{mlp_forward.1} parent=1 // pred_region
      %445 = dma.done [#allocation4], 128
    $region45: #{mlp_forward.1} parent=1 // pred_fallthru
      _
    %446 = vsyncpa [#allocation4], 1

</llo_original>
